<compile_context>
chip_gen: v5e
topology: v5e:2x2
jax: 0.10.0
libtpu: 0.0.40
codegen_flags: <defaults>
</compile_context>

<pallas_src>
import jax
import jax.numpy as jnp
import numpy as np
from jax.experimental import pallas as pl
from jax.experimental.pallas import tpu as pltpu


# ----------------------- packed-parameter buffer layout ----------------------
LANES = 128            # lane-dense width for every parameter slab / the output
W1_OFF = 0             # rows [0 : in_dim)      : W1  [in_dim, H]   (cols >= H zero)
W2_OFF = 16            # rows [16 : 144)        : W2  [H, H], zero-padded to 128x128
WC_OFF = W2_OFF + LANES            # rows [144 : 272) : Wc [H, out_dim], zero-padded
W_ROWS = WC_OFF + LANES            # 272 rows total (16-row aligned slabs, bf16 tiles)
B_ROWS = 8             # f32 bias buffer rows: 0 = b1, 1 = b2, 2 = bc, rest zero


def pack_weights(w1, w2, wc):
    """Pack the three weight matrices into one lane-dense bf16 buffer (single DMA)."""
    in_dim, hidden = w1.shape
    out_dim = wc.shape[1]
    assert in_dim <= 16 and hidden <= LANES and out_dim <= LANES
    p = jnp.zeros((W_ROWS, LANES), jnp.float32)
    p = p.at[W1_OFF:W1_OFF + in_dim, :hidden].set(w1)
    p = p.at[W2_OFF:W2_OFF + hidden, :hidden].set(w2)
    p = p.at[WC_OFF:WC_OFF + hidden, :out_dim].set(wc)
    return p.astype(jnp.bfloat16)


def pack_biases(b1, b2, bc):
    """Biases stay f32 (added in f32 anyway; avoids bf16 quantization + per-step cast)."""
    hidden = b1.shape[0]
    out_dim = bc.shape[0]
    b = jnp.zeros((B_ROWS, LANES), jnp.float32)
    b = b.at[0, :hidden].set(b1)
    b = b.at[1, :hidden].set(b2)
    b = b.at[2, :out_dim].set(bc)
    return b


# ------------------------------- Pallas kernel --------------------------------
def gcn_fused_kernel(a_ref, x_ref, w_ref, b_ref, out_ref):
    """Fused: relu(A(X W1)+b1) -> relu(A(H W2)+b2) -> H Wc + bc on a [M, .] sub-batch.

    a_ref is the block-diagonal kron(I_Bt, A_hat) so the A-propagation for the whole
    sub-batch is a single fat MXU matmul per layer.
    """
    f32 = jnp.float32
    bf16 = jnp.bfloat16
    in_dim = x_ref.shape[-1]

    a = a_ref[...]                                   # [M, M]  f32 block-diag A_hat
    x = x_ref[...]                                   # [M, F]  bf16

    w1 = w_ref[W1_OFF:W1_OFF + in_dim, :]            # [F, 128]   bf16
    w2 = w_ref[W2_OFF:W2_OFF + LANES, :]             # [128, 128] bf16 (zero-padded)
    wc = w_ref[WC_OFF:WC_OFF + LANES, :]             # [128, 128] bf16 (zero-padded)
    b1 = b_ref[0:1, :]                               # [1, 128]   f32
    b2 = b_ref[1:2, :]
    bc = b_ref[2:3, :]

    # ---- GCNConv 1: narrow feature dim contracted first, then one fat A-propagation
    xw1 = jnp.dot(x, w1, preferred_element_type=f32)                       # [M, 128]
    h1 = jnp.maximum(jnp.dot(a, xw1, preferred_element_type=f32) + b1, 0.0)

    # ---- GCNConv 2
    hw2 = jnp.dot(h1.astype(bf16), w2, preferred_element_type=f32)         # [M, 128]
    h2 = jnp.maximum(jnp.dot(a, hw2, preferred_element_type=f32) + b2, 0.0)

    # ---- classifier (lane-padded to 128 -> unmasked, lane-dense store)
    out_ref[...] = jnp.dot(h2.astype(bf16), wc, preferred_element_type=f32) + bc


# --------------------------------- wrappers ------------------------------------
def gcn_lstm_forward_batched(a_hat, x_bnf, w_packed, b_packed, out_dim, num_blocks=2):
    """x_bnf: [B, N, F] batch of node tables. Returns [B, N, out_dim].

    num_blocks=2 shards the batch across the two v7x TensorCores; on v5e/v6e the
    extra grid step is negligible.  A_hat / params use constant block indices so
    they are DMA'd once, not once per step.
    """
    b, n, f = x_bnf.shape
    if b % num_blocks != 0:
        num_blocks = 1
    bt = b // num_blocks
    m = bt * n                                       # matmul M dimension per grid step

    # block-diagonal A_hat: one fat matmul propagates the whole sub-batch at once
    a_blk = jnp.kron(jnp.eye(bt, dtype=a_hat.dtype), a_hat)    # [m, m] f32
    x2d = x_bnf.reshape(b * n, f).astype(jnp.bfloat16)         # [B*N, F]

    flops = 2 * num_blocks * (m * f * LANES            # X @ W1
                              + 2 * m * m * LANES      # two A-propagations
                              + 2 * m * LANES * LANES) # W2 + classifier matmuls
    bytes_accessed = (a_blk.size * 4 + x2d.size * 2 + w_packed.size * 2
                      + b_packed.size * 4 + b * n * LANES * 4)

    out = pl.pallas_call(
        gcn_fused_kernel,
        out_shape=jax.ShapeDtypeStruct((b * n, LANES), jnp.float32),
        grid=(num_blocks,),
        in_specs=[
            pl.BlockSpec((m, m), lambda i: (0, 0)),            # block-diag A_hat (shared)
            pl.BlockSpec((m, f), lambda i: (i, 0)),            # sub-batch node features
            pl.BlockSpec((W_ROWS, LANES), lambda i: (0, 0)),   # packed bf16 weights
            pl.BlockSpec((B_ROWS, LANES), lambda i: (0, 0)),   # f32 biases
        ],
        out_specs=pl.BlockSpec((m, LANES), lambda i: (i, 0)),
        compiler_params=pltpu.CompilerParams(dimension_semantics=("parallel",)),
        cost_estimate=pl.CostEstimate(flops=flops, transcendentals=0,
                                      bytes_accessed=bytes_accessed),
    )(a_blk, x2d, w_packed, b_packed)

    return out[:, :out_dim].reshape(b, n, out_dim)             # drop lane padding


def gcn_lstm_forward(a_hat, x, w_packed, b_packed, out_dim):
    """Single node table [N, F] -> module output (classifier(h).squeeze())."""
    out = gcn_lstm_forward_batched(a_hat, x[None], w_packed, b_packed, out_dim,
                                   num_blocks=1)               # [1, N, out_dim]
    return jnp.squeeze(out)


# ------------------------------ plain-JAX glue ----------------------------------
def normalized_adjacency(edge_index, edge_weight_param, num_nodes):
    """Dense A_hat = D^{-1/2}(A_w + I)D^{-1/2}, matching PyG gcn_norm."""
    ew = jnp.exp(edge_weight_param)                  # torch.exp(self.edge_weight)
    row, col = edge_index[0], edge_index[1]          # source, target
    loop = jnp.arange(num_nodes, dtype=edge_index.dtype)
    row = jnp.concatenate([row, loop])
    col = jnp.concatenate([col, loop])
    ew = jnp.concatenate([ew, jnp.ones((num_nodes,), ew.dtype)])  # self-loop fill=1

    deg = jnp.zeros((num_nodes,), ew.dtype).at[col].add(ew)
    dinv = jnp.where(deg > 0, jax.lax.rsqrt(deg), 0.0)
    norm = dinv[row] * ew * dinv[col]
    # message passing: out[col] += norm * x[row]  =>  A_hat[col, row] = norm
    a = jnp.zeros((num_nodes, num_nodes), ew.dtype).at[col, row].add(norm)
    return a


def reference_forward(a_hat, x, w1, b1, w2, b2, wc, bc):
    h = jnp.maximum(a_hat @ (x @ w1) + b1, 0.0)
    h = jnp.maximum(a_hat @ (h @ w2) + b2, 0.0)
    return jnp.squeeze(h @ wc + bc)


# ---------------------------------- driver --------------------------------------
if __name__ == "__main__":
    N, IN_DIM, HIDDEN, OUT_DIM, B = 16, 4, 32, 1, 8

    # deterministic graph: bidirectional ring over N nodes -> E = 2N edges
    src = np.arange(N)
    dst = (src + 1) % N
    edge_index = jnp.asarray(
        np.stack([np.concatenate([src, dst]), np.concatenate([dst, src])]),
        dtype=jnp.int32)                              # [2, E]
    E = edge_index.shape[1]

    # parameters (deterministic synthetic init; torch manual_seed init not replicated)
    key = jax.random.PRNGKey(0)
    k = jax.random.split(key, 8)
    edge_weight = jnp.zeros((E,), jnp.float32)        # nn.Parameter(zeros(E))
    w1 = jax.random.normal(k[0], (IN_DIM, HIDDEN), jnp.float32) * 0.3
    b1 = jax.random.normal(k[1], (HIDDEN,), jnp.float32) * 0.1
    w2 = jax.random.normal(k[2], (HIDDEN, HIDDEN), jnp.float32) * 0.2
    b2 = jax.random.normal(k[3], (HIDDEN,), jnp.float32) * 0.1
    wc = jax.random.normal(k[4], (HIDDEN, OUT_DIM), jnp.float32) * 0.2
    bc = jax.random.normal(k[5], (OUT_DIM,), jnp.float32) * 0.1

    # inputs: B independent node tables, folded into the matmul M-dimension in-kernel
    x = jax.random.normal(k[6], (B, N, IN_DIM), jnp.float32)

    a_hat = normalized_adjacency(edge_index, edge_weight, N)
    w_packed = pack_weights(w1, w2, wc)
    b_packed = pack_biases(b1, b2, bc)

    # batched run (grid=(2,) "parallel": one half-batch per TensorCore on v7x)
    out_b = gcn_lstm_forward_batched(a_hat, x, w_packed, b_packed, OUT_DIM)  # [B, N, 1]
    out_b = jax.block_until_ready(out_b)
    out_b = jnp.squeeze(out_b, axis=-1)                                      # [B, N]

    ref_b = jax.vmap(
        lambda xb: reference_forward(a_hat, xb, w1, b1, w2, b2, wc, bc))(x)
    # bf16 weights/activations on the MXU with f32 accumulation; A_hat and biases f32
    np.testing.assert_allclose(np.asarray(out_b), np.asarray(ref_b),
                               rtol=2e-2, atol=2e-2)

    # single-sample path (module semantics: classifier(h).squeeze() -> shape [N])
    out_single = jax.block_until_ready(
        gcn_lstm_forward(a_hat, x[0], w_packed, b_packed, OUT_DIM))
    assert out_single.shape == (N,)
    np.testing.assert_allclose(np.asarray(out_single), np.asarray(ref_b[0]),
                               rtol=2e-2, atol=2e-2)

    print("KERNEL_OK")
</pallas_src>

<mosaic_0001>
module attributes {stable_mosaic.version = 11 : i64} {
  func.func @gcn_fused_kernel(%arg0: i32, %arg1: memref<64x64xf32, #tpu.memory_space<vmem>>, %arg2: memref<64x4xbf16, #tpu.memory_space<vmem>>, %arg3: memref<272x128xbf16, #tpu.memory_space<vmem>>, %arg4: memref<8x128xf32, #tpu.memory_space<vmem>>, %arg5: memref<64x128xf32, #tpu.memory_space<vmem>>) attributes {dimension_semantics = [#tpu.dimension_semantics<parallel>], iteration_bounds = array<i64: 2>, scalar_prefetch = 0 : i64, scratch_operands = 0 : i64, tpu.core_type = #tpu.core_type<tc>, window_params = [{pipeline_mode = #tpu.pipeline_mode<synchronous>, transform_indices = @transform_0, window_bounds = array<i64: 64, 64>}, {transform_indices = @transform_1, window_bounds = array<i64: 64, 4>}, {pipeline_mode = #tpu.pipeline_mode<synchronous>, transform_indices = @transform_2, window_bounds = array<i64: 272, 128>}, {pipeline_mode = #tpu.pipeline_mode<synchronous>, transform_indices = @transform_3, window_bounds = array<i64: 8, 128>}, {transform_indices = @transform_4, window_bounds = array<i64: 64, 128>}]} {
    %c0 = arith.constant 0 : index
    %c0_0 = arith.constant 0 : index
    %0 = vector.load %arg1[%c0, %c0_0] : memref<64x64xf32, #tpu.memory_space<vmem>>, vector<64x64xf32>
    %c0_1 = arith.constant 0 : index
    %c0_2 = arith.constant 0 : index
    %1 = vector.load %arg2[%c0_1, %c0_2] : memref<64x4xbf16, #tpu.memory_space<vmem>>, vector<64x4xbf16>
    %c0_3 = arith.constant 0 : index
    %c0_4 = arith.constant 0 : index
    %2 = vector.load %arg3[%c0_3, %c0_4] : memref<272x128xbf16, #tpu.memory_space<vmem>>, vector<4x128xbf16>
    %c16 = arith.constant 16 : index
    %c0_5 = arith.constant 0 : index
    %3 = vector.load %arg3[%c16, %c0_5] : memref<272x128xbf16, #tpu.memory_space<vmem>>, vector<128x128xbf16>
    %c144 = arith.constant 144 : index
    %c0_6 = arith.constant 0 : index
    %4 = vector.load %arg3[%c144, %c0_6] : memref<272x128xbf16, #tpu.memory_space<vmem>>, vector<128x128xbf16>
    %c0_7 = arith.constant 0 : index
    %c0_8 = arith.constant 0 : index
    %5 = vector.load %arg4[%c0_7, %c0_8] : memref<8x128xf32, #tpu.memory_space<vmem>>, vector<1x128xf32>
    %c1 = arith.constant 1 : index
    %c0_9 = arith.constant 0 : index
    %6 = vector.load %arg4[%c1, %c0_9] : memref<8x128xf32, #tpu.memory_space<vmem>>, vector<1x128xf32>
    %c2 = arith.constant 2 : index
    %c0_10 = arith.constant 0 : index
    %7 = vector.load %arg4[%c2, %c0_10] : memref<8x128xf32, #tpu.memory_space<vmem>>, vector<1x128xf32>
    %cst = arith.constant dense<0.000000e+00> : vector<64x128xf32>
    %8 = tpu.matmul %1, %2, %cst {dimension_numbers = #tpu.dot_dimension_numbers<[1], [0], [0], [1], [0, 0, 1, 1], [], []>} : vector<64x4xbf16>, vector<4x128xbf16>, vector<64x128xf32> -> vector<64x128xf32>
    %cst_11 = arith.constant dense<0.000000e+00> : vector<64x128xf32>
    %9 = tpu.matmul %0, %8, %cst_11 {dimension_numbers = #tpu.dot_dimension_numbers<[1], [0], [0], [1], [0, 0, 1, 1], [], []>} : vector<64x64xf32>, vector<64x128xf32>, vector<64x128xf32> -> vector<64x128xf32>
    %10 = vector.broadcast %5 : vector<1x128xf32> to vector<64x128xf32>
    %11 = arith.addf %9, %10 : vector<64x128xf32>
    %cst_12 = arith.constant 0.000000e+00 : f32
    %12 = vector.broadcast %cst_12 : f32 to vector<64x128xf32>
    %13 = arith.maximumf %11, %12 : vector<64x128xf32>
    %14 = arith.truncf %13 : vector<64x128xf32> to vector<64x128xbf16>
    %cst_13 = arith.constant dense<0.000000e+00> : vector<64x128xf32>
    %15 = tpu.matmul %14, %3, %cst_13 {dimension_numbers = #tpu.dot_dimension_numbers<[1], [0], [0], [1], [0, 0, 1, 1], [], []>} : vector<64x128xbf16>, vector<128x128xbf16>, vector<64x128xf32> -> vector<64x128xf32>
    %cst_14 = arith.constant dense<0.000000e+00> : vector<64x128xf32>
    %16 = tpu.matmul %0, %15, %cst_14 {dimension_numbers = #tpu.dot_dimension_numbers<[1], [0], [0], [1], [0, 0, 1, 1], [], []>} : vector<64x64xf32>, vector<64x128xf32>, vector<64x128xf32> -> vector<64x128xf32>
    %17 = vector.broadcast %6 : vector<1x128xf32> to vector<64x128xf32>
    %18 = arith.addf %16, %17 : vector<64x128xf32>
    %cst_15 = arith.constant 0.000000e+00 : f32
    %19 = vector.broadcast %cst_15 : f32 to vector<64x128xf32>
    %20 = arith.maximumf %18, %19 : vector<64x128xf32>
    %21 = arith.truncf %20 : vector<64x128xf32> to vector<64x128xbf16>
    %cst_16 = arith.constant dense<0.000000e+00> : vector<64x128xf32>
    %22 = tpu.matmul %21, %4, %cst_16 {dimension_numbers = #tpu.dot_dimension_numbers<[1], [0], [0], [1], [0, 0, 1, 1], [], []>} : vector<64x128xbf16>, vector<128x128xbf16>, vector<64x128xf32> -> vector<64x128xf32>
    %23 = vector.broadcast %7 : vector<1x128xf32> to vector<64x128xf32>
    %24 = arith.addf %22, %23 : vector<64x128xf32>
    %c0_17 = arith.constant 0 : index
    %c0_18 = arith.constant 0 : index
    %25 = vector.load %arg5[%c0_17, %c0_18] : memref<64x128xf32, #tpu.memory_space<vmem>>, vector<64x128xf32>
    tpu.vector_store %arg5[%c0_17, %c0_18], %24 {strides = array<i32>} : memref<64x128xf32, #tpu.memory_space<vmem>>, vector<64x128xf32>,
    return
  }
  func.func @transform_0(%arg0: i32) -> (i32, i32) {
    %c0_i32 = arith.constant 0 : i32
    %c0_i32_0 = arith.constant 0 : i32
    %c0_i32_1 = arith.constant 0 : i32
    return %c0_i32, %c0_i32_0 : i32, i32
  }
  func.func @transform_1(%arg0: i32) -> (i32, i32) {
    %c0_i32 = arith.constant 0 : i32
    %c0_i32_0 = arith.constant 0 : i32
    return %arg0, %c0_i32 : i32, i32
  }
  func.func @transform_2(%arg0: i32) -> (i32, i32) {
    %c0_i32 = arith.constant 0 : i32
    %c0_i32_0 = arith.constant 0 : i32
    %c0_i32_1 = arith.constant 0 : i32
    return %c0_i32, %c0_i32_0 : i32, i32
  }
  func.func @transform_3(%arg0: i32) -> (i32, i32) {
    %c0_i32 = arith.constant 0 : i32
    %c0_i32_0 = arith.constant 0 : i32
    %c0_i32_1 = arith.constant 0 : i32
    return %c0_i32, %c0_i32_0 : i32, i32
  }
  func.func @transform_4(%arg0: i32) -> (i32, i32) {
    %c0_i32 = arith.constant 0 : i32
    %c0_i32_0 = arith.constant 0 : i32
    return %arg0, %c0_i32 : i32, i32
  }
}

</mosaic_0001>

<llo_original>
// kernel: tpu_custom_call.1
$region0: #{tpu_custom_call.1}
  #allocation0 [shape = 'u32[]', space=smem, size = 0x4, offset = 0x4, fixed_abs, tag = 'smem constant byte address 0x4 - core index']
  #allocation1 [shape = 'u32[72,128]{1,0:T(1,128)}', space=vmem, size = 0x9000, scoped, tag = 'internal scratch']
  %s0 = inlined_call_operand.vmem [shape: f32[64,64], index: 0, kind: input, shape index: {}]
  %s1 = inlined_call_operand.vmem [shape: bf16[128,4], index: 1, kind: input, shape index: {}]
  %s2 = inlined_call_operand.hbm [shape: bf16[272,128], index: 2, kind: input, shape index: {}]
  %s3 = inlined_call_operand.hbm [shape: f32[8,128], index: 3, kind: input, shape index: {}]
  %s4 = inlined_call_operand.hbm [shape: f32[128,128], index: 4, kind: output, shape index: {}]
  %s5 = sld [smem:[#allocation0]]
  $region57: #{tpu_custom_call.1} parent=0
    _
  %s7 = ssub.s32 1, %s5
  %s8 = scalar_select 0, %s7, %s5
  $region1: #{tpu_custom_call.1} parent=0
    #allocation2 [shape = 'u8[69632]{0}', space=vmem, size = 0x11000, scoped, tag = 'input window, operand 2, single buffered']
    #allocation3 [shape = 's32[2]{0}', space=sflag, size = 0x8, scoped, tag = 'scoped memory for tpu_custom_call.1']
    #allocation4 [shape = 's32[2]{0}', space=sflag, size = 0x8, scoped, tag = 'scoped memory for tpu_custom_call.1']
    #allocation5 [shape = 'u8[4096]{0}', space=vmem, size = 0x1000, scoped, tag = 'input window, operand 3, single buffered']
    #allocation6 [shape = 's32[1]{0}', space=sflag, size = 0x4, scoped, tag = 'scoped memory for tpu_custom_call.1']
    #allocation7 [shape = 'u8[65536]{0}', space=vmem, size = 0x10000, scoped, tag = 'output window, operand 0']
    %9 = vsyncpa [#allocation3], 0
    %10 = vsyncpa [#allocation6], 0
    %11 = vsyncpa [#allocation4], 0
    %s12 = scalar_lea.sflag [#allocation4], 1
    %13 = vsyncpa %s12, 0
    loop: start=0, step=1, limit=4
    $region2: #{tpu_custom_call.1} parent=1 // loop_pre_header
      _
    $region3: #{tpu_custom_call.1} parent=1 // loop_header
      %s15 = sphi 0, %s19
      %p16 = scmp.ge.s32.totalorder %s15, 4
      %s23 = sphi 0, %s23
      %s25 = sphi 0, %s23
      %s26 = sphi 0, %s25
      %s40 = sphi 0, %s26
      %s46 = sphi 0, %s48
      %s49 = sphi 0, %s46
      %s50 = sphi 0, %s49
      %s66 = sphi 0, %s50
      %s70 = sphi 0, %s70
      %s72 = sphi 0, %s70
      %s73 = sphi 0, %s72
      %s87 = sphi 0, %s73
      %s91 = sphi 0, %s91
      %s93 = sphi 0, %s91
      %s94 = sphi 0, %s93
      %s108 = sphi 0, %s94
      %s114 = sphi 0, %s116
      %s117 = sphi 0, %s114
      %s118 = sphi 0, %s117
      %s134 = sphi 0, %s118
    $region4: #{tpu_custom_call.1} parent=1 // loop_header_branch
      %18 = sbr.rel (%p16) target = $region8
    $region5: #{tpu_custom_call.1} parent=1 // loop_body
      %s20 = ssub.s32 %s15, 1
      %s21 = ssub.s32 %s15, 2
      %s22 = sadd.s32 %s15, 1
      %s24 = sadd.s32 %s23, 1
      %p27 = scmp.eq.s32.totalorder %s15, 1
      %p28 = scmp.ne.s32.totalorder %s23, %s25
      %p29 = scmp.eq.s32.totalorder %s15, 0
      %p30 = por %p28, %p29
      %p31 = scmp.ne.s32.totalorder %s23, %s25
      %p32 = scmp.eq.s32.totalorder %s20, 1
      %p33 = por %p31, %p32
      %p34 = scmp.ne.s32.totalorder %s25, %s26
      %p35 = scmp.eq.s32.totalorder %s20, 0
      %p36 = por %p34, %p35
      %p37 = scmp.ne.s32.totalorder %s25, %s26
      %p38 = scmp.eq.s32.totalorder %s21, 1
      %p39 = por %p37, %p38
      %p41 = scmp.ne.s32.totalorder %s26, %s40
      %p42 = scmp.eq.s32.totalorder %s21, 0
      %p43 = por %p41, %p42
      %s44 = ssub.s32 %s15, %s22
      %p45 = scmp.eq.s32.totalorder %s44, 0
      %s47 = sadd.s32 %s46, 1
      %s48 = scalar_select %p45, %s46, %s47
      %p51 = pneg %p45
      %p52 = scmp.eq.s32.totalorder %s15, 1
      %p53 = por %p51, %p52
      %p54 = scmp.ne.s32.totalorder %s46, %s49
      %p55 = scmp.eq.s32.totalorder %s15, 0
      %p56 = por %p54, %p55
      %p57 = scmp.ne.s32.totalorder %s46, %s49
      %p58 = scmp.eq.s32.totalorder %s20, 1
      %p59 = por %p57, %p58
      %p60 = scmp.ne.s32.totalorder %s49, %s50
      %p61 = scmp.eq.s32.totalorder %s20, 0
      %p62 = por %p60, %p61
      %p63 = scmp.ne.s32.totalorder %s49, %s50
      %p64 = scmp.eq.s32.totalorder %s21, 1
      %p65 = por %p63, %p64
      %p67 = scmp.ne.s32.totalorder %s50, %s66
      %p68 = scmp.eq.s32.totalorder %s21, 0
      %p69 = por %p67, %p68
      %s71 = sadd.s32 %s70, 1
      %p74 = scmp.eq.s32.totalorder %s15, 1
      %p75 = scmp.ne.s32.totalorder %s70, %s72
      %p76 = scmp.eq.s32.totalorder %s15, 0
      %p77 = por %p75, %p76
      %p78 = scmp.ne.s32.totalorder %s70, %s72
      %p79 = scmp.eq.s32.totalorder %s20, 1
      %p80 = por %p78, %p79
      %p81 = scmp.ne.s32.totalorder %s72, %s73
      %p82 = scmp.eq.s32.totalorder %s20, 0
      %p83 = por %p81, %p82
      %p84 = scmp.ne.s32.totalorder %s72, %s73
      %p85 = scmp.eq.s32.totalorder %s21, 1
      %p86 = por %p84, %p85
      %p88 = scmp.ne.s32.totalorder %s73, %s87
      %p89 = scmp.eq.s32.totalorder %s21, 0
      %p90 = por %p88, %p89
      %s92 = sadd.s32 %s91, 1
      %p95 = scmp.eq.s32.totalorder %s15, 1
      %p96 = scmp.ne.s32.totalorder %s91, %s93
      %p97 = scmp.eq.s32.totalorder %s15, 0
      %p98 = por %p96, %p97
      %p99 = scmp.ne.s32.totalorder %s91, %s93
      %p100 = scmp.eq.s32.totalorder %s20, 1
      %p101 = por %p99, %p100
      %p102 = scmp.ne.s32.totalorder %s93, %s94
      %p103 = scmp.eq.s32.totalorder %s20, 0
      %p104 = por %p102, %p103
      %p105 = scmp.ne.s32.totalorder %s93, %s94
      %p106 = scmp.eq.s32.totalorder %s21, 1
      %p107 = por %p105, %p106
      %p109 = scmp.ne.s32.totalorder %s94, %s108
      %p110 = scmp.eq.s32.totalorder %s21, 0
      %p111 = por %p109, %p110
      %s112 = ssub.s32 %s15, %s22
      %p113 = scmp.eq.s32.totalorder %s112, 0
      %s115 = sadd.s32 %s114, 1
      %s116 = scalar_select %p113, %s114, %s115
      %p119 = pneg %p113
      %p120 = scmp.eq.s32.totalorder %s15, 1
      %p121 = por %p119, %p120
      %p122 = scmp.ne.s32.totalorder %s114, %s117
      %p123 = scmp.eq.s32.totalorder %s15, 0
      %p124 = por %p122, %p123
      %p125 = scmp.ne.s32.totalorder %s114, %s117
      %p126 = scmp.eq.s32.totalorder %s20, 1
      %p127 = por %p125, %p126
      %p128 = scmp.ne.s32.totalorder %s117, %s118
      %p129 = scmp.eq.s32.totalorder %s20, 0
      %p130 = por %p128, %p129
      %p131 = scmp.ne.s32.totalorder %s117, %s118
      %p132 = scmp.eq.s32.totalorder %s21, 1
      %p133 = por %p131, %p132
      %p135 = scmp.ne.s32.totalorder %s118, %s134
      %p136 = scmp.eq.s32.totalorder %s21, 0
      %p137 = por %p135, %p136
      %p138 = scmp.le.s32.totalorder 1, %s15
      %p139 = scmp.lt.s32.totalorder %s15, 3
      %p140 = pnand %p138, %p139
      %p141 = pneg %p140
      // Predicated region
      $region9: #{tpu_custom_call.1} parent=5 // pred_check
        _
      $region10: #{tpu_custom_call.1} parent=5 // pred_check_branch
        %143 = sbr.rel (%p140) target = $region12
      $region11: #{tpu_custom_call.1} parent=5 // pred_region
        %s144 = ssub.s32 %s15, 1
        // Predicated region
        $region13: #{tpu_custom_call.1} parent=11 // pred_check
          %p145 = pneg %p36
        $region14: #{tpu_custom_call.1} parent=11 // pred_check_branch
          %147 = sbr.rel (%p145) target = $region16
        $region15: #{tpu_custom_call.1} parent=11 // pred_region
          _
        $region16: #{tpu_custom_call.1} parent=11 // pred_fallthru
          _
        // Predicated region
        $region17: #{tpu_custom_call.1} parent=11 // pred_check
          %p148 = pneg %p83
        $region18: #{tpu_custom_call.1} parent=11 // pred_check_branch
          %150 = sbr.rel (%p148) target = $region20
        $region19: #{tpu_custom_call.1} parent=11 // pred_region
          %152 = vsyncadd [#allocation3], 0
          %s153 = sshll.u32 %s2, 4
          %s154 = int_to_ptr.hbm [resolvable:$true] %s153
          %s155 = sshll.u32 [#allocation2], 4
          %s156 = int_to_ptr.vmem [resolvable:$true] %s155
          %161 = dma.hbm_to_vmem [thread:$0]  %s154, 2176, %s156, [#allocation3], 64, 64, 4
        $region20: #{tpu_custom_call.1} parent=11 // pred_fallthru
          _
        // Predicated region
        $region21: #{tpu_custom_call.1} parent=11 // pred_check
          %p162 = pneg %p104
        $region22: #{tpu_custom_call.1} parent=11 // pred_check_branch
          %164 = sbr.rel (%p162) target = $region24
        $region23: #{tpu_custom_call.1} parent=11 // pred_region
          %166 = vsyncadd [#allocation6], 0
          %s168 = sshll.u32 %s3, 4
          %s169 = int_to_ptr.hbm [resolvable:$true] %s168
          %s170 = sshll.u32 [#allocation5], 4
          %s171 = int_to_ptr.vmem [resolvable:$true] %s170
          %173 = dma.hbm_to_vmem [thread:$0]  %s169, 128, %s171, [#allocation6]
        $region24: #{tpu_custom_call.1} parent=11 // pred_fallthru
          _
      $region12: #{tpu_custom_call.1} parent=5 // pred_fallthru
        _
      %p174 = scmp.lt.s32.totalorder %s15, 2
      // Predicated region
      $region25: #{tpu_custom_call.1} parent=5 // pred_check
        %p175 = pneg %p174
      $region26: #{tpu_custom_call.1} parent=5 // pred_check_branch
        %177 = sbr.rel (%p175) target = $region28
      $region27: #{tpu_custom_call.1} parent=5 // pred_region
        // Predicated region
        $region29: #{tpu_custom_call.1} parent=27 // pred_check
          %p178 = pneg %p56
        $region30: #{tpu_custom_call.1} parent=27 // pred_check_branch
          %180 = sbr.rel (%p178) target = $region32
        $region31: #{tpu_custom_call.1} parent=27 // pred_region
          %s181 = smul.u32 8, %s15
          %p182 = scmp.lt.s32.totalorder %s181, 15
          %s183 = scalar_select %p182, %s181, 15
          %s184 = smul.addr %s183, 4
          %s185 = scalar_lea.vmem %s1, %s184
          %s186 = smul.u32 8, %s15
        $region32: #{tpu_custom_call.1} parent=27 // pred_fallthru
          _
      $region28: #{tpu_custom_call.1} parent=5 // pred_fallthru
        _
      %p187 = scmp.le.s32.totalorder 1, %s15
      %p188 = scmp.lt.s32.totalorder %s15, 3
      %p189 = pnand %p187, %p188
      %p190 = pneg %p189
      // Predicated region
      $region33: #{tpu_custom_call.1} parent=5 // pred_check
        _
      $region34: #{tpu_custom_call.1} parent=5 // pred_check_branch
        %192 = sbr.rel (%p189) target = $region36
      $region35: #{tpu_custom_call.1} parent=5 // pred_region
        %s193 = ssub.s32 %s15, 1
        // Predicated region
        $region37: #{tpu_custom_call.1} parent=35 // pred_check
          %p194 = pneg %p83
        $region38: #{tpu_custom_call.1} parent=35 // pred_check_branch
          %196 = sbr.rel (%p194) target = $region40
        $region39: #{tpu_custom_call.1} parent=35 // pred_region
          %198 = dma.done [#allocation3], 2176
        $region40: #{tpu_custom_call.1} parent=35 // pred_fallthru
          _
        // Predicated region
        $region41: #{tpu_custom_call.1} parent=35 // pred_check
          %p199 = pneg %p104
        $region42: #{tpu_custom_call.1} parent=35 // pred_check_branch
          %201 = sbr.rel (%p199) target = $region44
        $region43: #{tpu_custom_call.1} parent=35 // pred_region
          %203 = dma.done [#allocation6], 128
        $region44: #{tpu_custom_call.1} parent=35 // pred_fallthru
          _
        %p204 = pneg %p36
        %p205 = pneg %p33
        %s206 = smul.u32 8, %s20
        %p207 = scmp.lt.s32.totalorder %s206, 15
        %s208 = scalar_select %p207, %s206, 15
        %s209 = smul.addr %s208, 4
        %s210 = scalar_lea.vmem %s1, %s209
        %p211 = pneg %p62
        %p212 = pneg %p59
        %p213 = pneg %p83
        %p214 = pneg %p80
        %p215 = pneg %p104
        %p216 = pneg %p101
        %p217 = pneg %p130
        %p218 = pneg %p127
        %s219 = sand.u32 %s117, 1
        %s220 = scalar_lea.sflag [#allocation4], %s219
        %s221 = sand.u32 %s117, 1
        %s222 = smul.addr %s221, 64
        %s223 = scalar_lea.vmem [#allocation7], %s222
        %s224 = smul.u32 8, %s20
        %p225 = scmp.lt.s32.totalorder %s224, 15
        %s226 = scalar_select %p225, %s224, 15
        %s227 = smul.addr %s226, 4
        %s228 = scalar_lea.vmem %s1, %s227
        %s229 = smul.u32 8, %s20
        %s230 = smul.u32 8, %s20
        %v232 = vld [vmem:[%s0] sm:$0xff]
        %v233 = vld [vmem:[%s0 + $0x8] sm:$0xff]
        %v234 = vld [vmem:[%s0 + $0x10] sm:$0xff]
        %v235 = vld [vmem:[%s0 + $0x18] sm:$0xff]
        %v236 = vld [vmem:[%s0 + $0x20] sm:$0xff]
        %v237 = vld [vmem:[%s0 + $0x28] sm:$0xff]
        %v238 = vld [vmem:[%s0 + $0x30] sm:$0xff]
        %v239 = vld [vmem:[%s0 + $0x38] sm:$0xff]
        %v240 = vld [vmem:[%s228] sm:$0xf]
        %v241 = vld [vmem:[%s228 + $0x4] sm:$0xf]
        %v242 = vld [vmem:[%s228 + $0x8] sm:$0xf]
        %v243 = vld [vmem:[%s228 + $0xc] sm:$0xf]
        %v244 = vld [vmem:[%s228 + $0x10] sm:$0xf]
        %v245 = vld [vmem:[%s228 + $0x14] sm:$0xf]
        %v246 = vld [vmem:[%s228 + $0x18] sm:$0xf]
        %v247 = vld [vmem:[%s228 + $0x1c] sm:$0xf]
        %v248 = vld [vmem:[#allocation2] sm:$0x3]
        %v249 = vld [vmem:[#allocation2 + $0x8] sm:$0xf]
        %v250 = vld [vmem:[#allocation2 + $0xc] sm:$0xf]
        %v251 = vld [vmem:[#allocation2 + $0x10] sm:$0xf]
        %v252 = vld [vmem:[#allocation2 + $0x14] sm:$0xf]
        %v253 = vld [vmem:[#allocation2 + $0x18] sm:$0xf]
        %v254 = vld [vmem:[#allocation2 + $0x1c] sm:$0xf]
        %v255 = vld [vmem:[#allocation2 + $0x20] sm:$0xf]
        %v256 = vld [vmem:[#allocation2 + $0x24] sm:$0xf]
        %v257 = vld [vmem:[#allocation2 + $0x28] sm:$0xf]
        %v258 = vld [vmem:[#allocation2 + $0x2c] sm:$0xf]
        %v259 = vld [vmem:[#allocation2 + $0x30] sm:$0xf]
        %v260 = vld [vmem:[#allocation2 + $0x34] sm:$0xf]
        %v261 = vld [vmem:[#allocation2 + $0x38] sm:$0xf]
        %v262 = vld [vmem:[#allocation2 + $0x3c] sm:$0xf]
        %v263 = vld [vmem:[#allocation2 + $0x40] sm:$0xf]
        %v264 = vld [vmem:[#allocation2 + $0x44] sm:$0xf]
        %v265 = vld [vmem:[#allocation2 + $0x48] sm:$0xf]
        %v266 = vld [vmem:[#allocation2 + $0x4c] sm:$0xf]
        %v267 = vld [vmem:[#allocation2 + $0x50] sm:$0xf]
        %v268 = vld [vmem:[#allocation2 + $0x54] sm:$0xf]
        %v269 = vld [vmem:[#allocation2 + $0x58] sm:$0xf]
        %v270 = vld [vmem:[#allocation2 + $0x5c] sm:$0xf]
        %v271 = vld [vmem:[#allocation2 + $0x60] sm:$0xf]
        %v272 = vld [vmem:[#allocation2 + $0x64] sm:$0xf]
        %v273 = vld [vmem:[#allocation2 + $0x68] sm:$0xf]
        %v274 = vld [vmem:[#allocation2 + $0x6c] sm:$0xf]
        %v275 = vld [vmem:[#allocation2 + $0x70] sm:$0xf]
        %v276 = vld [vmem:[#allocation2 + $0x74] sm:$0xf]
        %v277 = vld [vmem:[#allocation2 + $0x78] sm:$0xf]
        %v278 = vld [vmem:[#allocation2 + $0x7c] sm:$0xf]
        %v279 = vld [vmem:[#allocation2 + $0x80] sm:$0xf]
        %v280 = vld [vmem:[#allocation2 + $0x84] sm:$0xf]
        %v281 = vld [vmem:[#allocation5] sm:$0x1]
        %v282 = vld [vmem:[#allocation5 + $0x1] sm:$0x1]
        %v283 = vld [vmem:[#allocation5 + $0x2] sm:$0x1]
        %v292 = vunpack.c.l.b16 %v240
        %v293 = vunpack.c.l.b16 %v241
        %v294 = vunpack.c.l.b16 %v242
        %v295 = vunpack.c.l.b16 %v243
        %v296 = vunpack.c.l.b16 %v244
        %v297 = vunpack.c.l.b16 %v245
        %v298 = vunpack.c.l.b16 %v246
        %v299 = vunpack.c.l.b16 %v247
        %v300 = vpack.c.b16 %v293, %v292
        %v301 = vpack.c.b16 %v295, %v294
        %v302 = vpack.c.b16 %v297, %v296
        %v303 = vpack.c.b16 %v299, %v298
        %vm304 = vcmask 31744
        %v306 = vsel %vm304, %v300, 0
        %v309 = vsel %vm304, %v301, 0
        %v312 = vsel %vm304, %v302, 0
        %v315 = vsel %vm304, %v303, 0
        %vm317 = vcmask 1041408
        %v319 = vsel %vm317, %v248, 0
        %321 = vmatpush.bf16.msra.mxu0 0
        %322 = vmatpush.bf16.msra.mxu0 0
        %323 = vmatpush.bf16.msra.mxu0 0
        %324 = vmatpush.bf16.msra.mxu0 0
        %325 = vmatpush.bf16.msra.mxu0 0
        %326 = vmatpush.bf16.msra.mxu0 0
        %327 = vmatpush.bf16.msra.mxu0 0
        %328 = vmatpush.bf16.msra.mxu0 %v319
        %329 = vmatmul.bf16.gmra.mxu0 %v306
        %v330 = vpop.f32.mrf.mxu0
        %v331 = vadd.f32 0.0, %v330
        %v332 = vpop.f32.mrf.mxu0
        %v333 = vadd.f32 0.0, %v332
        %334 = vmatmul.bf16.gmra.mxu0 %v309
        %v335 = vpop.f32.mrf.mxu0
        %v336 = vadd.f32 0.0, %v335
        %v337 = vpop.f32.mrf.mxu0
        %v338 = vadd.f32 0.0, %v337
        %339 = vmatmul.bf16.gmra.mxu0 %v312
        %v340 = vpop.f32.mrf.mxu0
        %v341 = vadd.f32 0.0, %v340
        %v342 = vpop.f32.mrf.mxu0
        %v343 = vadd.f32 0.0, %v342
        %344 = vmatmul.bf16.gmra.mxu0 %v315
        %v345 = vpop.f32.mrf.mxu0
        %v346 = vadd.f32 0.0, %v345
        %v347 = vpop.f32.mrf.mxu0
        %v348 = vadd.f32 0.0, %v347
        %349 = vdwg.mxu0
        %v350 = vperm.slane %v281, 0
        %vm351 = vcmask 523264
        %v353 = vsel %vm351, %v232, 0
        %v356 = vsel %vm351, %v233, 0
        %v359 = vsel %vm351, %v234, 0
        %v362 = vsel %vm351, %v235, 0
        %v365 = vsel %vm351, %v236, 0
        %v368 = vsel %vm351, %v237, 0
        %v371 = vsel %vm351, %v238, 0
        %v374 = vsel %vm351, %v239, 0
        %376 = vmatpush.msra.mxu0 0.0
        %377 = vmatpush.msra.mxu0 0.0
        %378 = vmatpush.msra.mxu0 0.0
        %379 = vmatpush.msra.mxu0 0.0
        %380 = vmatpush.msra.mxu0 0.0
        %381 = vmatpush.msra.mxu0 0.0
        %382 = vmatpush.msra.mxu0 0.0
        %383 = vmatpush.msra.mxu0 0.0
        %384 = vmatpush.msra.mxu0 %v348
        %385 = vmatpush.msra.mxu0 %v346
        %386 = vmatpush.msra.mxu0 %v343
        %387 = vmatpush.msra.mxu0 %v341
        %388 = vmatpush.msra.mxu0 %v338
        %389 = vmatpush.msra.mxu0 %v336
        %390 = vmatpush.msra.mxu0 %v333
        %391 = vmatpush.msra.mxu0 %v331
        %392 = vmatmul.f32.gmra.mxu0 %v353
        %v393 = vpop.f32.mrf.mxu0
        %v394 = vadd.f32 %v350, %v393
        %395 = vmatmul.f32.gmra.mxu0 %v356
        %v396 = vpop.f32.mrf.mxu0
        %v397 = vadd.f32 %v350, %v396
        %398 = vmatmul.f32.gmra.mxu0 %v359
        %v399 = vpop.f32.mrf.mxu0
        %v400 = vadd.f32 %v350, %v399
        %401 = vmatmul.f32.gmra.mxu0 %v362
        %v402 = vpop.f32.mrf.mxu0
        %v403 = vadd.f32 %v350, %v402
        %404 = vmatmul.f32.gmra.mxu0 %v365
        %v405 = vpop.f32.mrf.mxu0
        %v406 = vadd.f32 %v350, %v405
        %407 = vmatmul.f32.gmra.mxu0 %v368
        %v408 = vpop.f32.mrf.mxu0
        %v409 = vadd.f32 %v350, %v408
        %410 = vmatmul.f32.gmra.mxu0 %v371
        %v411 = vpop.f32.mrf.mxu0
        %v412 = vadd.f32 %v350, %v411
        %413 = vmatmul.f32.gmra.mxu0 %v374
        %v414 = vpop.f32.mrf.mxu0
        %v415 = vadd.f32 %v350, %v414
        %416 = vdwg.mxu0
        %v417 = vmax.f32 %v394, 0.0
        %v418 = vmax.f32 %v397, 0.0
        %v419 = vmax.f32 %v400, 0.0
        %v420 = vmax.f32 %v403, 0.0
        %v421 = vmax.f32 %v406, 0.0
        %v422 = vmax.f32 %v409, 0.0
        %v423 = vmax.f32 %v412, 0.0
        %v424 = vmax.f32 %v415, 0.0
        %v425 = vpack.c.bf16 %v418, %v417
        %v426 = vpack.c.bf16 %v420, %v419
        %v427 = vpack.c.bf16 %v422, %v421
        %v428 = vpack.c.bf16 %v424, %v423
        %v445 = vunpack.c.l.b16 %v249
        %v446 = vunpack.c.l.b16 %v250
        %v447 = vunpack.c.l.b16 %v251
        %v448 = vunpack.c.l.b16 %v252
        %v449 = vunpack.c.l.b16 %v253
        %v450 = vunpack.c.l.b16 %v254
        %v451 = vunpack.c.l.b16 %v255
        %v452 = vunpack.c.l.b16 %v256
        %v453 = vunpack.c.l.b16 %v257
        %v454 = vunpack.c.l.b16 %v258
        %v455 = vunpack.c.l.b16 %v259
        %v456 = vunpack.c.l.b16 %v260
        %v457 = vunpack.c.l.b16 %v261
        %v458 = vunpack.c.l.b16 %v262
        %v459 = vunpack.c.l.b16 %v263
        %v460 = vunpack.c.l.b16 %v264
        %v461 = vpack.c.b16 %v446, %v445
        %v462 = vpack.c.b16 %v448, %v447
        %v463 = vpack.c.b16 %v450, %v449
        %v464 = vpack.c.b16 %v452, %v451
        %v465 = vpack.c.b16 %v454, %v453
        %v466 = vpack.c.b16 %v456, %v455
        %v467 = vpack.c.b16 %v458, %v457
        %v468 = vpack.c.b16 %v460, %v459
        %477 = vmatpush.bf16.msra.mxu0 %v468
        %478 = vmatpush.bf16.msra.mxu0 %v467
        %479 = vmatpush.bf16.msra.mxu0 %v466
        %480 = vmatpush.bf16.msra.mxu0 %v465
        %481 = vmatpush.bf16.msra.mxu0 %v464
        %482 = vmatpush.bf16.msra.mxu0 %v463
        %483 = vmatpush.bf16.msra.mxu0 %v462
        %484 = vmatpush.bf16.msra.mxu0 %v461
        %485 = vmatmul.bf16.gmra.mxu0 %v425
        %v486 = vpop.f32.mrf.mxu0
        %v487 = vadd.f32 0.0, %v486
        %v488 = vpop.f32.mrf.mxu0
        %v489 = vadd.f32 0.0, %v488
        %490 = vmatmul.bf16.gmra.mxu0 %v426
        %v491 = vpop.f32.mrf.mxu0
        %v492 = vadd.f32 0.0, %v491
        %v493 = vpop.f32.mrf.mxu0
        %v494 = vadd.f32 0.0, %v493
        %495 = vmatmul.bf16.gmra.mxu0 %v427
        %v496 = vpop.f32.mrf.mxu0
        %v497 = vadd.f32 0.0, %v496
        %v498 = vpop.f32.mrf.mxu0
        %v499 = vadd.f32 0.0, %v498
        %500 = vmatmul.bf16.gmra.mxu0 %v428
        %v501 = vpop.f32.mrf.mxu0
        %v502 = vadd.f32 0.0, %v501
        %v503 = vpop.f32.mrf.mxu0
        %v504 = vadd.f32 0.0, %v503
        %505 = vdwg.mxu0
        %v506 = vperm.slane %v282, 0
        %507 = vmatpush.msra.mxu0 0.0
        %508 = vmatpush.msra.mxu0 0.0
        %509 = vmatpush.msra.mxu0 0.0
        %510 = vmatpush.msra.mxu0 0.0
        %511 = vmatpush.msra.mxu0 0.0
        %512 = vmatpush.msra.mxu0 0.0
        %513 = vmatpush.msra.mxu0 0.0
        %514 = vmatpush.msra.mxu0 0.0
        %515 = vmatpush.msra.mxu0 %v504
        %516 = vmatpush.msra.mxu0 %v502
        %517 = vmatpush.msra.mxu0 %v499
        %518 = vmatpush.msra.mxu0 %v497
        %519 = vmatpush.msra.mxu0 %v494
        %520 = vmatpush.msra.mxu0 %v492
        %521 = vmatpush.msra.mxu0 %v489
        %522 = vmatpush.msra.mxu0 %v487
        %523 = vmatmul.f32.gmra.mxu0 %v353
        %v524 = vpop.f32.mrf.mxu0
        %v525 = vadd.f32 %v506, %v524
        %526 = vmatmul.f32.gmra.mxu0 %v356
        %v527 = vpop.f32.mrf.mxu0
        %v528 = vadd.f32 %v506, %v527
        %529 = vmatmul.f32.gmra.mxu0 %v359
        %v530 = vpop.f32.mrf.mxu0
        %v531 = vadd.f32 %v506, %v530
        %532 = vmatmul.f32.gmra.mxu0 %v362
        %v533 = vpop.f32.mrf.mxu0
        %v534 = vadd.f32 %v506, %v533
        %535 = vmatmul.f32.gmra.mxu0 %v365
        %v536 = vpop.f32.mrf.mxu0
        %v537 = vadd.f32 %v506, %v536
        %538 = vmatmul.f32.gmra.mxu0 %v368
        %v539 = vpop.f32.mrf.mxu0
        %v540 = vadd.f32 %v506, %v539
        %541 = vmatmul.f32.gmra.mxu0 %v371
        %v542 = vpop.f32.mrf.mxu0
        %v543 = vadd.f32 %v506, %v542
        %544 = vmatmul.f32.gmra.mxu0 %v374
        %v545 = vpop.f32.mrf.mxu0
        %v546 = vadd.f32 %v506, %v545
        %547 = vdwg.mxu0
        %v548 = vmax.f32 %v525, 0.0
        %v549 = vmax.f32 %v528, 0.0
        %v550 = vmax.f32 %v531, 0.0
        %v551 = vmax.f32 %v534, 0.0
        %v552 = vmax.f32 %v537, 0.0
        %v553 = vmax.f32 %v540, 0.0
        %v554 = vmax.f32 %v543, 0.0
        %v555 = vmax.f32 %v546, 0.0
        %v556 = vpack.c.bf16 %v549, %v548
        %v557 = vpack.c.bf16 %v551, %v550
        %v558 = vpack.c.bf16 %v553, %v552
        %v559 = vpack.c.bf16 %v555, %v554
        %v560 = vperm.slane %v283, 0
        %v577 = vunpack.c.l.b16 %v265
        %v578 = vunpack.c.l.b16 %v266
        %v579 = vunpack.c.l.b16 %v267
        %v580 = vunpack.c.l.b16 %v268
        %v581 = vunpack.c.l.b16 %v269
        %v582 = vunpack.c.l.b16 %v270
        %v583 = vunpack.c.l.b16 %v271
        %v584 = vunpack.c.l.b16 %v272
        %v585 = vunpack.c.l.b16 %v273
        %v586 = vunpack.c.l.b16 %v274
        %v587 = vunpack.c.l.b16 %v275
        %v588 = vunpack.c.l.b16 %v276
        %v589 = vunpack.c.l.b16 %v277
        %v590 = vunpack.c.l.b16 %v278
        %v591 = vunpack.c.l.b16 %v279
        %v592 = vunpack.c.l.b16 %v280
        %v593 = vpack.c.b16 %v578, %v577
        %v594 = vpack.c.b16 %v580, %v579
        %v595 = vpack.c.b16 %v582, %v581
        %v596 = vpack.c.b16 %v584, %v583
        %v597 = vpack.c.b16 %v586, %v585
        %v598 = vpack.c.b16 %v588, %v587
        %v599 = vpack.c.b16 %v590, %v589
        %v600 = vpack.c.b16 %v592, %v591
        %609 = vmatpush.bf16.msra.mxu0 %v600
        %610 = vmatpush.bf16.msra.mxu0 %v599
        %611 = vmatpush.bf16.msra.mxu0 %v598
        %612 = vmatpush.bf16.msra.mxu0 %v597
        %613 = vmatpush.bf16.msra.mxu0 %v596
        %614 = vmatpush.bf16.msra.mxu0 %v595
        %615 = vmatpush.bf16.msra.mxu0 %v594
        %616 = vmatpush.bf16.msra.mxu0 %v593
        %617 = vmatmul.bf16.gmra.mxu0 %v556
        %v618 = vpop.f32.mrf.mxu0
        %v619 = vadd.f32 %v560, %v618
        %v620 = vpop.f32.mrf.mxu0
        %v621 = vadd.f32 %v560, %v620
        %622 = vmatmul.bf16.gmra.mxu0 %v557
        %v623 = vpop.f32.mrf.mxu0
        %v624 = vadd.f32 %v560, %v623
        %v625 = vpop.f32.mrf.mxu0
        %v626 = vadd.f32 %v560, %v625
        %627 = vmatmul.bf16.gmra.mxu0 %v558
        %v628 = vpop.f32.mrf.mxu0
        %v629 = vadd.f32 %v560, %v628
        %v630 = vpop.f32.mrf.mxu0
        %v631 = vadd.f32 %v560, %v630
        %632 = vmatmul.bf16.gmra.mxu0 %v559
        %v633 = vpop.f32.mrf.mxu0
        %v634 = vadd.f32 %v560, %v633
        %v635 = vpop.f32.mrf.mxu0
        %v636 = vadd.f32 %v560, %v635
        %637 = vdwg.mxu0
        %638 = vst [vmem:[%s223] sm:$0xff] %v619
        %639 = vst [vmem:[%s223 + $0x8] sm:$0xff] %v621
        %640 = vst [vmem:[%s223 + $0x10] sm:$0xff] %v624
        %641 = vst [vmem:[%s223 + $0x18] sm:$0xff] %v626
        %642 = vst [vmem:[%s223 + $0x20] sm:$0xff] %v629
        %643 = vst [vmem:[%s223 + $0x28] sm:$0xff] %v631
        %644 = vst [vmem:[%s223 + $0x30] sm:$0xff] %v634
        %645 = vst [vmem:[%s223 + $0x38] sm:$0xff] %v636
        %s646 = sand.u32 %s117, 1
        %s647 = scalar_lea.sflag [#allocation4], %s646
        %s648 = sand.u32 %s117, 1
        %s649 = smul.addr %s648, 64
        %s650 = scalar_lea.vmem [#allocation7], %s649
        // Predicated region
        $region45: #{tpu_custom_call.1} parent=35 // pred_check
          %p651 = pneg %p127
        $region46: #{tpu_custom_call.1} parent=35 // pred_check_branch
          %653 = sbr.rel (%p651) target = $region48
        $region47: #{tpu_custom_call.1} parent=35 // pred_region
          %s654 = smul.u32 8, %s20
          %656 = vsyncadd %s647, 0
          %s657 = smul.addr %s654, 8
          %s658 = scalar_lea.hbm %s4, %s657
          %s659 = sshll.u32 %s650, 4
          %s660 = int_to_ptr.vmem [resolvable:$true] %s659
          %s661 = sshll.u32 %s658, 4
          %s662 = int_to_ptr.hbm [resolvable:$true] %s661
          %667 = dma.vmem_to_hbm [thread:$0]  %s660, 1024, %s662, %s647, 128, 128, 8
        $region48: #{tpu_custom_call.1} parent=35 // pred_fallthru
          _
      $region36: #{tpu_custom_call.1} parent=5 // pred_fallthru
        _
      %p668 = scmp.le.s32.totalorder 2, %s15
      // Predicated region
      $region49: #{tpu_custom_call.1} parent=5 // pred_check
        %p669 = pneg %p668
      $region50: #{tpu_custom_call.1} parent=5 // pred_check_branch
        %671 = sbr.rel (%p669) target = $region52
      $region51: #{tpu_custom_call.1} parent=5 // pred_region
        %s672 = ssub.s32 %s15, 2
        // Predicated region
        $region53: #{tpu_custom_call.1} parent=51 // pred_check
          %p673 = pneg %p133
        $region54: #{tpu_custom_call.1} parent=51 // pred_check_branch
          %675 = sbr.rel (%p673) target = $region56
        $region55: #{tpu_custom_call.1} parent=51 // pred_region
          %s676 = sand.u32 %s118, 1
          %s677 = scalar_lea.sflag [#allocation4], %s676
          %s678 = sand.u32 %s118, 1
          %s679 = smul.addr %s678, 64
          %s680 = scalar_lea.vmem [#allocation7], %s679
          %682 = dma.done %s677, 1024
        $region56: #{tpu_custom_call.1} parent=51 // pred_fallthru
          _
      $region52: #{tpu_custom_call.1} parent=5 // pred_fallthru
        _
    $region6: #{tpu_custom_call.1} parent=1 // loop_footer
      %s19 = sadd.s32 1, %s15
    $region7: #{tpu_custom_call.1} parent=1 // loop_footer_branch
      %14 = sbr.rel target = $region3
    $region8: #{tpu_custom_call.1} parent=1 // loop_exit
      _
    %683 = vsyncpa [#allocation3], 1
    %s684 = scalar_lea.sflag [#allocation3], 1
    %685 = vsyncpa %s684, 1
    %686 = vsyncpa [#allocation6], 1
    %687 = vsyncpa [#allocation4], 1
    %s688 = scalar_lea.sflag [#allocation4], 1
    %689 = vsyncpa %s688, 1

</llo_original>
